<compile_context>
chip_gen: v7x
topology: tpu7x:2x2x1
jax: 0.10.0
libtpu: 0.0.40
codegen_flags: <defaults>
</compile_context>

<pallas_src>
import jax
import jax.numpy as jnp
from jax import lax
from jax.experimental import pallas as pl
from jax.experimental.pallas import tpu as pltpu

_LANES = 128
_SUB = 512            # rows per inner strip: 512*128*4B = 256 KiB f32 temporaries


def _chip_config():
    """Per-generation (tm_max, num_parallel_slices, vmem_limit_bytes)."""
    kind = ""
    try:
        kind = jax.devices()[0].device_kind.lower()
    except Exception:  # pragma: no cover - defensive
        pass
    if ("v5 lite" in kind) or ("v5e" in kind) or ("v5lite" in kind):
        # 16 MiB default scoped VMEM; 4096-row blocks (8 MiB of f32 input
        # buffers) + explicit 32 MiB scoped limit keeps ~2x headroom.
        return 4096, 1, 32 << 20
    if ("v7" in kind) or ("tpu7" in kind):
        # 2 TensorCores, 64 MiB physical VMEM, ~3.2 TB/s HBM: big blocks to
        # amortize per-step overhead + 2-way parallel grid split.
        return 8192, 2, 48 << 20
    if "v6" in kind:
        # 1 TC, 128 MiB physical VMEM: big blocks, no parallel split.
        return 8192, 1, 64 << 20
    # Unknown chip: conservative defaults that fit any default scoped VMEM.
    return 4096, 1, None


_TM_MAX, _NUM_SLICES, _VMEM_LIMIT = _chip_config()


def _make_kernel(tm, rows, steps, num_slices):
    """Masked squared-error partial-sum kernel.

    grid is either (nblocks,) on 1-TC chips, or (2, steps) on v7x where the
    leading axis is "parallel" (one slice per TensorCore) and the trailing
    axis is the sequential reduction over that slice's row-blocks.
    """
    sub = min(_SUB, tm)
    n_full = tm // sub
    last = tm - n_full * sub          # 0 or a multiple of 8 (tm, sub are)

    def kernel(o_ref, t_ref, part_ref):
        if num_slices == 2:
            c = pl.program_id(0)      # core-parallel axis
            j = pl.program_id(1)      # sequential reduction axis
            blk = c * steps + j       # logical (UNclamped) block index
        else:
            j = pl.program_id(0)
            blk = j

        @pl.when(j == 0)
        def _init():
            part_ref[...] = jnp.zeros_like(part_ref)

        rows_rem = rows - blk * tm    # valid rows left in this unclamped block

        def strip(start, size, masked):
            tf = t_ref[pl.ds(start, size), :].astype(jnp.float32)
            of = o_ref[pl.ds(start, size), :].astype(jnp.float32)
            of = jnp.where(tf == 0.0, 0.0, of)   # output.masked_fill_(target==0, 0)
            d = of - tf
            sq = d * d
            if masked:
                rid = lax.broadcasted_iota(jnp.int32, (size, _LANES), 0) + start
                sq = jnp.where(rid < rows_rem, sq, 0.0)
            # (size,128) -> (size//8, 8, 128) is a layout-preserving split of the
            # sublane axis; the axis-0 reduce is pure VPU adds into one vreg
            # (no cross-sublane XLU reduce on the per-step path).
            part_ref[...] += jnp.sum(sq.reshape(size // 8, 8, _LANES), axis=0)

        def run(masked):
            for i in range(n_full):           # static starts -> zero-cost views
                strip(i * sub, sub, masked)
            if last:
                strip(n_full * sub, last, masked)

        @pl.when(rows_rem >= tm)              # full block: hot path, no masking
        def _full():
            run(False)

        @pl.when(rows_rem < tm)               # tail block / clamped duplicate block
        def _tail():
            run(True)

    return kernel


def _masked_sq_sum_ref(o, t):
    of = o.astype(jnp.float32)
    tf = t.astype(jnp.float32)
    of = jnp.where(tf == 0.0, 0.0, of)
    d = of - tf
    return jnp.sum(d * d)


@jax.jit
def my_loss(output, target):
    """JAX/Pallas equivalent of MyLoss.forward (returns the scalar loss, f32)."""
    assert output.shape == target.shape
    o = output.reshape(-1)                    # free bitcast, keeps original dtype
    t = target.reshape(-1)
    n = o.shape[0]

    rows = n // _LANES
    rem = n - rows * _LANES

    if rows < 8:
        # Tiny input (<1024 elems): kernel launch overhead dominates; plain jnp.
        return _masked_sq_sum_ref(o, t)

    if rem:
        # TODO(synk): ragged path still materializes a prefix-slice copy of both
        # inputs; a truly zero-copy variant needs a 1-D BlockSpec + lane mask.
        o_main, t_main = o[: rows * _LANES], t[: rows * _LANES]
        tail = _masked_sq_sum_ref(o[rows * _LANES:], t[rows * _LANES:])
    else:
        o_main, t_main = o, t                 # common case: zero extra HBM copies
        tail = jnp.float32(0.0)

    o2 = o_main.reshape(rows, _LANES)
    t2 = t_main.reshape(rows, _LANES)

    # Block rows: as large as the per-generation budget allows (kernel is pure
    # HBM-bandwidth bound); keep sublane (8) divisibility.
    if rows >= _TM_MAX:
        tm = _TM_MAX
    else:
        tm = (rows // 8) * 8
    nblocks = pl.cdiv(rows, tm)

    if _NUM_SLICES == 2 and nblocks > 1:
        # v7x: 2-way split across the two TensorCores.  Clamp so an
        # out-of-range last block of slice c=1 re-reads a valid block; its
        # contribution is fully masked in-kernel (rows_rem <= 0 uses the
        # UNclamped block index).
        steps = pl.cdiv(nblocks, 2)
        grid = (2, steps)

        def in_map(c, j):
            return (jnp.minimum(c * steps + j, nblocks - 1), 0)

        out_map = lambda c, j: (c, 0, 0)
        semantics = ("parallel", "arbitrary")
        num_slices = 2
    else:
        # Single-TensorCore chips (v5e/v6e) or a single block: plain serial
        # reduction grid, no clamp, no duplicate-block HBM reads.
        steps = nblocks
        grid = (nblocks,)
        in_map = lambda j: (j, 0)
        out_map = lambda j: (0, 0, 0)
        semantics = ("arbitrary",)
        num_slices = 1

    partials = pl.pallas_call(
        _make_kernel(tm, rows, steps, num_slices),
        out_shape=jax.ShapeDtypeStruct((num_slices, 8, _LANES), jnp.float32),
        grid_spec=pltpu.PrefetchScalarGridSpec(
            num_scalar_prefetch=0,
            grid=grid,
            in_specs=[
                pl.BlockSpec((tm, _LANES), in_map),
                pl.BlockSpec((tm, _LANES), in_map),
            ],
            out_specs=pl.BlockSpec((None, 8, _LANES), out_map),
        ),
        compiler_params=pltpu.CompilerParams(
            dimension_semantics=semantics,
            vmem_limit_bytes=_VMEM_LIMIT,
        ),
    )(o2, t2)

    return jnp.sum(partials) + tail


def _reference(output, target):
    o = jnp.where(target == 0.0, 0.0, output).astype(jnp.float32)
    t = target.astype(jnp.float32)
    return jnp.sum((o - t) ** 2)


if __name__ == "__main__":
    key = jax.random.PRNGKey(0)
    k1, k2, k3, k4, k5, k6 = jax.random.split(key, 6)

    # 1) Small NCHW shapes consistent with the module's elementwise forward.
    output = jax.random.normal(k1, (2, 4, 16, 16), dtype=jnp.float32)
    tgt_vals = jax.random.normal(k2, (2, 4, 16, 16), dtype=jnp.float32)
    target = jnp.where(tgt_vals > 0.0, tgt_vals, 0.0)   # plenty of exact zeros

    loss = my_loss(output, target)
    jax.block_until_ready(loss)
    ref = _reference(output, target)
    assert jnp.allclose(loss, ref, rtol=1e-5, atol=1e-5), (loss, ref)

    # 2) Multi-block path with a possible partial tail block (exercises the
    #    in-kernel tail masking and, on v7x, the clamped duplicate block).
    out2 = jax.random.normal(k3, (5, 4, 125, 256), dtype=jnp.float32)
    tgt2_vals = jax.random.normal(k4, (5, 4, 125, 256), dtype=jnp.float32)
    tgt2 = jnp.where(tgt2_vals > 0.0, tgt2_vals, 0.0)

    loss2 = my_loss(out2, tgt2)
    jax.block_until_ready(loss2)
    ref2 = _reference(out2, tgt2)
    assert jnp.allclose(loss2, ref2, rtol=1e-4, atol=1e-4), (loss2, ref2)

    # 3) Ragged size (numel % 128 != 0): aligned-prefix kernel + jnp remainder.
    out3 = jax.random.normal(k5, (3, 3, 13, 17), dtype=jnp.float32)
    tgt3_vals = jax.random.normal(k6, (3, 3, 13, 17), dtype=jnp.float32)
    tgt3 = jnp.where(tgt3_vals > 0.0, tgt3_vals, 0.0)

    loss3 = my_loss(out3, tgt3)
    jax.block_until_ready(loss3)
    ref3 = _reference(out3, tgt3)
    assert jnp.allclose(loss3, ref3, rtol=1e-4, atol=1e-4), (loss3, ref3)

    # 4) bf16 inputs (original-dtype DMA, f32 accumulation inside the kernel).
    out4 = output.astype(jnp.bfloat16)
    tgt4 = target.astype(jnp.bfloat16)
    loss4 = my_loss(out4, tgt4)
    jax.block_until_ready(loss4)
    ref4 = _reference(out4, tgt4)
    assert jnp.allclose(loss4, ref4, rtol=1e-3, atol=1e-3), (loss4, ref4)

    # 5) Tiny-input fallback path (no kernel launch).
    out5 = output.reshape(-1)[:30].reshape(2, 3, 5)
    tgt5 = target.reshape(-1)[:30].reshape(2, 3, 5)
    loss5 = my_loss(out5, tgt5)
    jax.block_until_ready(loss5)
    ref5 = _reference(out5, tgt5)
    assert jnp.allclose(loss5, ref5, rtol=1e-5, atol=1e-5), (loss5, ref5)

    print("KERNEL_OK")
</pallas_src>

<mosaic_0001>
module attributes {stable_mosaic.version = 11 : i64} {
  func.func @kernel(%arg0: i32, %arg1: memref<16x128xf32, #tpu.memory_space<vmem>>, %arg2: memref<16x128xf32, #tpu.memory_space<vmem>>, %arg3: memref<1x8x128xf32, #tpu.memory_space<vmem>>) attributes {dimension_semantics = [#tpu.dimension_semantics<arbitrary>], iteration_bounds = array<i64: 1>, scalar_prefetch = 0 : i64, scratch_operands = 0 : i64, tpu.core_type = #tpu.core_type<tc>, window_params = [{transform_indices = @transform_0, window_bounds = array<i64: 16, 128>}, {transform_indices = @transform_1, window_bounds = array<i64: 16, 128>}, {pipeline_mode = #tpu.pipeline_mode<synchronous>, transform_indices = @transform_2, window_bounds = array<i64: 1, 8, 128>}]} {
    %c0_i32 = arith.constant 0 : i32
    %0 = arith.cmpi eq, %arg0, %c0_i32 : i32
    %1 = arith.extui %0 : i1 to i32
    %c0_i32_0 = arith.constant 0 : i32
    %2 = arith.cmpi ne, %1, %c0_i32_0 : i32
    scf.if %2 {
      %cst = arith.constant 0.000000e+00 : f32
      %11 = vector.broadcast %cst : f32 to vector<8x128xf32>
      %c0 = arith.constant 0 : index
      %c0_6 = arith.constant 0 : index
      %c0_7 = arith.constant 0 : index
      %12 = vector.load %arg3[%c0, %c0_6, %c0_7] : memref<1x8x128xf32, #tpu.memory_space<vmem>>, vector<1x8x128xf32>
      %13 = vector.shape_cast %12 : vector<1x8x128xf32> to vector<8x128xf32>
      %14 = vector.shape_cast %11 : vector<8x128xf32> to vector<1x8x128xf32>
      tpu.vector_store %arg3[%c0, %c0_6, %c0_7], %14 {strides = array<i32>} : memref<1x8x128xf32, #tpu.memory_space<vmem>>, vector<1x8x128xf32>,
    } else {
    }
    %c16_i32 = arith.constant 16 : i32
    %3 = arith.muli %arg0, %c16_i32 : i32
    %c16_i32_1 = arith.constant 16 : i32
    %4 = arith.subi %c16_i32_1, %3 : i32
    %c16_i32_2 = arith.constant 16 : i32
    %5 = arith.cmpi sge, %4, %c16_i32_2 : i32
    %6 = arith.extui %5 : i1 to i32
    %c0_i32_3 = arith.constant 0 : i32
    %7 = arith.cmpi ne, %6, %c0_i32_3 : i32
    scf.if %7 {
      %c0 = arith.constant 0 : index
      %c0_6 = arith.constant 0 : index
      %11 = vector.load %arg2[%c0, %c0_6] : memref<16x128xf32, #tpu.memory_space<vmem>>, vector<16x128xf32>
      %c0_7 = arith.constant 0 : index
      %c0_8 = arith.constant 0 : index
      %12 = vector.load %arg1[%c0_7, %c0_8] : memref<16x128xf32, #tpu.memory_space<vmem>>, vector<16x128xf32>
      %cst = arith.constant 0.000000e+00 : f32
      %13 = vector.broadcast %cst : f32 to vector<16x128xf32>
      %14 = arith.cmpf oeq, %11, %13 : vector<16x128xf32>
      %cst_9 = arith.constant 0.000000e+00 : f32
      %15 = vector.broadcast %cst_9 : f32 to vector<16x128xf32>
      %16 = arith.select %14, %15, %12 : vector<16x128xi1>, vector<16x128xf32>
      %17 = arith.subf %16, %11 : vector<16x128xf32>
      %18 = arith.mulf %17, %17 : vector<16x128xf32>
      %c0_10 = arith.constant 0 : index
      %c0_11 = arith.constant 0 : index
      %c0_12 = arith.constant 0 : index
      %19 = vector.load %arg3[%c0_10, %c0_11, %c0_12] : memref<1x8x128xf32, #tpu.memory_space<vmem>>, vector<1x8x128xf32>
      %20 = vector.shape_cast %19 : vector<1x8x128xf32> to vector<8x128xf32>
      %21 = vector.shape_cast %18 : vector<16x128xf32> to vector<2x8x128xf32>
      %cst_13 = arith.constant dense<0.000000e+00> : vector<8x128xf32>
      %22 = vector.multi_reduction <add>, %21, %cst_13 [0] : vector<2x8x128xf32> to vector<8x128xf32>
      %23 = arith.addf %20, %22 : vector<8x128xf32>
      %c0_14 = arith.constant 0 : index
      %c0_15 = arith.constant 0 : index
      %c0_16 = arith.constant 0 : index
      %24 = vector.load %arg3[%c0_14, %c0_15, %c0_16] : memref<1x8x128xf32, #tpu.memory_space<vmem>>, vector<1x8x128xf32>
      %25 = vector.shape_cast %24 : vector<1x8x128xf32> to vector<8x128xf32>
      %26 = vector.shape_cast %23 : vector<8x128xf32> to vector<1x8x128xf32>
      tpu.vector_store %arg3[%c0_14, %c0_15, %c0_16], %26 {strides = array<i32>} : memref<1x8x128xf32, #tpu.memory_space<vmem>>, vector<1x8x128xf32>,
    } else {
    }
    %c16_i32_4 = arith.constant 16 : i32
    %8 = arith.cmpi slt, %4, %c16_i32_4 : i32
    %9 = arith.extui %8 : i1 to i32
    %c0_i32_5 = arith.constant 0 : i32
    %10 = arith.cmpi ne, %9, %c0_i32_5 : i32
    scf.if %10 {
      %c0 = arith.constant 0 : index
      %c0_6 = arith.constant 0 : index
      %11 = vector.load %arg2[%c0, %c0_6] : memref<16x128xf32, #tpu.memory_space<vmem>>, vector<16x128xf32>
      %c0_7 = arith.constant 0 : index
      %c0_8 = arith.constant 0 : index
      %12 = vector.load %arg1[%c0_7, %c0_8] : memref<16x128xf32, #tpu.memory_space<vmem>>, vector<16x128xf32>
      %cst = arith.constant 0.000000e+00 : f32
      %13 = vector.broadcast %cst : f32 to vector<16x128xf32>
      %14 = arith.cmpf oeq, %11, %13 : vector<16x128xf32>
      %cst_9 = arith.constant 0.000000e+00 : f32
      %15 = vector.broadcast %cst_9 : f32 to vector<16x128xf32>
      %16 = arith.select %14, %15, %12 : vector<16x128xi1>, vector<16x128xf32>
      %17 = arith.subf %16, %11 : vector<16x128xf32>
      %18 = arith.mulf %17, %17 : vector<16x128xf32>
      %19 = tpu.iota {dimensions = array<i32: 0>} : vector<16x128xi32>
      %c0_i32_10 = arith.constant 0 : i32
      %20 = vector.broadcast %c0_i32_10 : i32 to vector<16x128xi32>
      %21 = arith.addi %19, %20 : vector<16x128xi32>
      %22 = vector.broadcast %4 : i32 to vector<16x128xi32>
      %23 = arith.cmpi slt, %21, %22 : vector<16x128xi32>
      %cst_11 = arith.constant 0.000000e+00 : f32
      %24 = vector.broadcast %cst_11 : f32 to vector<16x128xf32>
      %25 = arith.select %23, %18, %24 : vector<16x128xi1>, vector<16x128xf32>
      %c0_12 = arith.constant 0 : index
      %c0_13 = arith.constant 0 : index
      %c0_14 = arith.constant 0 : index
      %26 = vector.load %arg3[%c0_12, %c0_13, %c0_14] : memref<1x8x128xf32, #tpu.memory_space<vmem>>, vector<1x8x128xf32>
      %27 = vector.shape_cast %26 : vector<1x8x128xf32> to vector<8x128xf32>
      %28 = vector.shape_cast %25 : vector<16x128xf32> to vector<2x8x128xf32>
      %cst_15 = arith.constant dense<0.000000e+00> : vector<8x128xf32>
      %29 = vector.multi_reduction <add>, %28, %cst_15 [0] : vector<2x8x128xf32> to vector<8x128xf32>
      %30 = arith.addf %27, %29 : vector<8x128xf32>
      %c0_16 = arith.constant 0 : index
      %c0_17 = arith.constant 0 : index
      %c0_18 = arith.constant 0 : index
      %31 = vector.load %arg3[%c0_16, %c0_17, %c0_18] : memref<1x8x128xf32, #tpu.memory_space<vmem>>, vector<1x8x128xf32>
      %32 = vector.shape_cast %31 : vector<1x8x128xf32> to vector<8x128xf32>
      %33 = vector.shape_cast %30 : vector<8x128xf32> to vector<1x8x128xf32>
      tpu.vector_store %arg3[%c0_16, %c0_17, %c0_18], %33 {strides = array<i32>} : memref<1x8x128xf32, #tpu.memory_space<vmem>>, vector<1x8x128xf32>,
    } else {
    }
    return
  }
  func.func @transform_0(%arg0: i32) -> (i32, i32) {
    %c0_i32 = arith.constant 0 : i32
    %c0_i32_0 = arith.constant 0 : i32
    return %arg0, %c0_i32 : i32, i32
  }
  func.func @transform_1(%arg0: i32) -> (i32, i32) {
    %c0_i32 = arith.constant 0 : i32
    %c0_i32_0 = arith.constant 0 : i32
    return %arg0, %c0_i32 : i32, i32
  }
  func.func @transform_2(%arg0: i32) -> (i32, i32, i32) {
    %c0_i32 = arith.constant 0 : i32
    %c0_i32_0 = arith.constant 0 : i32
    %c0_i32_1 = arith.constant 0 : i32
    %c0_i32_2 = arith.constant 0 : i32
    return %c0_i32, %c0_i32_0, %c0_i32_1 : i32, i32, i32
  }
}

</mosaic_0001>

<llo_original>
// kernel: my_loss.1
$region0: #{my_loss.1}
  #allocation0 [shape = 'u32[]', space=smem, size = 0x4, offset = 0x4, fixed_abs, tag = 'smem constant byte address 0x4 - core index']
  #allocation1 [shape = 'u32[144,128]{1,0:T(1,128)}', space=vmem, size = 0x12000, scoped, tag = 'internal scratch']
  %s0 = inlined_call_operand.vmem [shape: f32[16,128], index: 0, kind: input, shape index: {}]
  %s1 = inlined_call_operand.vmem [shape: f32[16,128], index: 1, kind: input, shape index: {}]
  %s2 = inlined_call_operand.vmem [shape: f32[1,8,128], index: 2, kind: output, shape index: {}]
  %s3 = sld [smem:[#allocation0]]
  $region30: #{my_loss.1} parent=0
    _
  %s5 = ssub.s32 1, %s3
  %s6 = scalar_select 0, %s5, %s3
  // Predicated region
  $region2: #{my_loss.1} parent=0 // pred_check
    _
  $region3: #{my_loss.1} parent=0 // pred_check_branch
    %8 = sbr.rel (0) target = $region5
  $region4: #{my_loss.1} parent=0 // pred_region
    _
  $region5: #{my_loss.1} parent=0 // pred_fallthru
    _
  // Predicated region
  $region6: #{my_loss.1} parent=0 // pred_check
    _
  $region7: #{my_loss.1} parent=0 // pred_check_branch
    %10 = sbr.rel (0) target = $region9
  $region8: #{my_loss.1} parent=0 // pred_region
    _
  $region9: #{my_loss.1} parent=0 // pred_fallthru
    _
  %p11 = scmp.eq.s32.totalorder 0, 0
  // Predicated region
  $region10: #{my_loss.1} parent=0 // pred_check
    %p12 = pneg %p11
  $region11: #{my_loss.1} parent=0 // pred_check_branch
    %14 = sbr.rel (%p12) target = $region13
  $region12: #{my_loss.1} parent=0 // pred_region
    %15 = vst [vmem:[%s2] sm:$0xff] 0.0
  $region13: #{my_loss.1} parent=0 // pred_fallthru
    _
  %s16 = smul.u32 0, 16
  %s17 = ssub.s32 16, %s16
  %p18 = scmp.ge.s32.totalorder %s17, 16
  // Predicated region
  $region14: #{my_loss.1} parent=0 // pred_check
    %p19 = pneg %p18
  $region15: #{my_loss.1} parent=0 // pred_check_branch
    %21 = sbr.rel (%p19) target = $region17
  $region16: #{my_loss.1} parent=0 // pred_region
    %v22 = vld [vmem:[%s1] sm:$0xff]
    %v23 = vld [vmem:[%s1 + $0x8] sm:$0xff]
    %v24 = vld [vmem:[%s0] sm:$0xff]
    %v25 = vld [vmem:[%s0 + $0x8] sm:$0xff]
    %vm26 = vcmp.eq.f32.partialorder %v22, 0.0
    %vm27 = vcmp.eq.f32.partialorder %v23, 0.0
    %v28 = vsel %vm26, 0.0, %v24
    %v29 = vsel %vm27, 0.0, %v25
    %v30 = vsub.f32 %v28, %v22
    %v31 = vsub.f32 %v29, %v23
    %v32 = vmul.f32 %v30, %v30
    %v33 = vmul.f32 %v31, %v31
    %v34 = vld [vmem:[%s2] sm:$0xff]
    %v35 = vadd.f32 %v32, %v33
    %v36 = vadd.f32 %v34, %v35
    %37 = vst [vmem:[%s2] sm:$0xff] %v36
  $region17: #{my_loss.1} parent=0 // pred_fallthru
    _
  %p38 = scmp.lt.s32.totalorder %s17, 16
  // Predicated region
  $region18: #{my_loss.1} parent=0 // pred_check
    %p39 = pneg %p38
  $region19: #{my_loss.1} parent=0 // pred_check_branch
    %41 = sbr.rel (%p39) target = $region21
  $region20: #{my_loss.1} parent=0 // pred_region
    %v42 = vld [vmem:[%s1] sm:$0xff]
    %v43 = vld [vmem:[%s1 + $0x8] sm:$0xff]
    %v44 = vld [vmem:[%s0] sm:$0xff]
    %v45 = vld [vmem:[%s0 + $0x8] sm:$0xff]
    %vm46 = vcmp.eq.f32.partialorder %v42, 0.0
    %vm47 = vcmp.eq.f32.partialorder %v43, 0.0
    %v48 = vsel %vm46, 0.0, %v44
    %v49 = vsel %vm47, 0.0, %v45
    %v50 = vsub.f32 %v48, %v42
    %v51 = vsub.f32 %v49, %v43
    %v52 = vmul.f32 %v50, %v50
    %v53 = vmul.f32 %v51, %v51
    %v54 = vlaneseq
    %v55 = vshrl.u32 %v54, 7
    %v56 = vadd.s32 %v55, 8
    %v57 = vstv %s17
    %vm58 = vcmp.lt.s32.totalorder %v55, %v57
    %vm59 = vcmp.lt.s32.totalorder %v56, %v57
    %v60 = vsel %vm58, %v52, 0.0
    %v61 = vsel %vm59, %v53, 0.0
    %v62 = vld [vmem:[%s2] sm:$0xff]
    %v63 = vadd.f32 %v60, %v61
    %v64 = vadd.f32 %v62, %v63
    %65 = vst [vmem:[%s2] sm:$0xff] %v64
  $region21: #{my_loss.1} parent=0 // pred_fallthru
    _
  // Predicated region
  $region22: #{my_loss.1} parent=0 // pred_check
    _
  $region23: #{my_loss.1} parent=0 // pred_check_branch
    %67 = sbr.rel (0) target = $region25
  $region24: #{my_loss.1} parent=0 // pred_region
    _
  $region25: #{my_loss.1} parent=0 // pred_fallthru
    _
  // Predicated region
  $region26: #{my_loss.1} parent=0 // pred_check
    _
  $region27: #{my_loss.1} parent=0 // pred_check_branch
    %69 = sbr.rel (0) target = $region29
  $region28: #{my_loss.1} parent=0 // pred_region
    _
  $region29: #{my_loss.1} parent=0 // pred_fallthru
    _

</llo_original>
